<compile_context>
chip_gen: v5e
topology: v5e:2x2
jax: 0.10.0
libtpu: 0.0.40
codegen_flags: <defaults>
</compile_context>

<pallas_src>
import functools

import jax
import jax.numpy as jnp
from jax.experimental import pallas as pl
from jax.experimental.pallas import tpu as pltpu


def _residual_kernel(x_ref, w1_ref, b1_ref, w2_ref, b2_ref, o_ref):
    x = x_ref[...]                                   # (tm, Hp) f32 — exact residual source

    # lin1 + swish: cast to weight dtype (bf16) only for the MXU, accumulate in f32.
    h = jnp.dot(x.astype(w1_ref.dtype), w1_ref[...],
                preferred_element_type=jnp.float32) + b1_ref[...]
    h = h * jax.nn.sigmoid(h)                        # f32 swish (v5e has no bf16 VPU/EUP)

    # lin2 + swish
    h = jnp.dot(h.astype(w2_ref.dtype), w2_ref[...],
                preferred_element_type=jnp.float32) + b2_ref[...]
    h = h * jax.nn.sigmoid(h)

    # residual add in f32, store in the output dtype (bf16 on the fast path).
    o_ref[...] = (x + h).astype(o_ref.dtype)


def _round_up(a, b):
    return (a + b - 1) // b * b


@functools.partial(jax.jit, static_argnames=("tile_m", "use_bf16"))
def residual_layer(x, w1, b1, w2, b2, *, tile_m=1024, use_bf16=True):
    """x: [N, H]; w*: [H, H] stored transposed (y = x @ W + b); b*: [H] or [1, H].

    Returns bf16 when use_bf16=True (f32-accumulated, f32 residual add), else f32.
    tile_m is in *packed* rows (each packed row carries `pack` original rows when
    H < 128), i.e. tile_m=1024 with H=32 streams 4096 original rows per grid step.
    """
    N, H = x.shape

    # ---- lane-dense packing for small H (H=32 -> pack=4 -> 128 lanes) ----------
    pack = (128 // H) if (H < 128 and 128 % H == 0) else 1
    Hp = H * pack

    if pack > 1:
        eye = jnp.eye(pack, dtype=w1.dtype)
        w1p = jnp.kron(eye, w1)                      # (Hp, Hp) block-diagonal
        w2p = jnp.kron(eye, w2)
        b1p = jnp.tile(b1.reshape(1, H), (1, pack))  # (1, Hp)
        b2p = jnp.tile(b2.reshape(1, H), (1, pack))
    else:
        w1p, w2p = w1, w2
        b1p, b2p = b1.reshape(1, H), b2.reshape(1, H)

    # ---- pack rows: [N, H] -> [Np, Hp]; only the tiny <pack tail is padded ------
    n_pad = (-N) % pack
    Np = (N + n_pad) // pack
    x_p = x if n_pad == 0 else jnp.pad(x, ((0, n_pad), (0, 0)))
    x_p = x_p.reshape(Np, Hp).astype(jnp.float32)    # streamed f32 (cast to bf16 in-kernel)

    # ---- row tiling: >=2 parallel steps (v7x megacore), 16-row quantum, cdiv grid
    tm = min(tile_m, max(16, _round_up(pl.cdiv(Np, 2), 16)))
    grid = pl.cdiv(Np, tm)                           # partial last block is masked by Pallas

    # ---- dtypes ------------------------------------------------------------------
    w_dtype = jnp.bfloat16 if use_bf16 else jnp.float32
    out_dtype = jnp.bfloat16 if use_bf16 else jnp.float32
    w1p = w1p.astype(w_dtype)
    w2p = w2p.astype(w_dtype)
    b1p = b1p.astype(jnp.float32)
    b2p = b2p.astype(jnp.float32)

    # ---- VMEM limit sized from actual usage (double-buffered tiles + weights) ----
    out_isize = 2 if use_bf16 else 4
    w_isize = 2 if use_bf16 else 4
    vmem_needed = (2 * tm * Hp * 4            # x tiles (f32, double-buffered)
                   + 2 * tm * Hp * out_isize  # out tiles (double-buffered)
                   + 2 * 2 * Hp * Hp * w_isize  # resident w1, w2 (double-buffered)
                   + 4 * tm * Hp * 4)         # f32 intermediates headroom
    vmem_limit = int(min(max(3 * vmem_needed, 16 * 1024 * 1024), 60 * 1024 * 1024))

    out = pl.pallas_call(
        _residual_kernel,
        out_shape=jax.ShapeDtypeStruct((Np, Hp), out_dtype),
        grid_spec=pltpu.PrefetchScalarGridSpec(
            num_scalar_prefetch=0,
            grid=(grid,),
            in_specs=[
                pl.BlockSpec((tm, Hp), lambda i: (i, 0)),   # x tile (streamed)
                pl.BlockSpec((Hp, Hp), lambda i: (0, 0)),   # w1 (resident)
                pl.BlockSpec((1, Hp), lambda i: (0, 0)),    # b1
                pl.BlockSpec((Hp, Hp), lambda i: (0, 0)),   # w2 (resident)
                pl.BlockSpec((1, Hp), lambda i: (0, 0)),    # b2
            ],
            out_specs=pl.BlockSpec((tm, Hp), lambda i: (i, 0)),
        ),
        compiler_params=pltpu.CompilerParams(
            dimension_semantics=("parallel",),
            vmem_limit_bytes=vmem_limit),
    )(x_p, w1p, b1p, w2p, b2p)

    # ---- unpack (pure reshape/view; slice only if the tail was padded) ----------
    out = out.reshape(Np * pack, H)
    if n_pad:
        out = out[:N]
    return out


def glorot_orthogonal(key, fan_in, fan_out, scale=2.0, dtype=jnp.float32):
    """glorot_orthogonal init (orthogonal matrix rescaled so that
    Var(W) = scale / ((fan_in + fan_out) / 2)), matching torch_geometric."""
    a = jax.random.normal(key, (fan_in, fan_out), dtype=jnp.float32)
    q, r = jnp.linalg.qr(a)
    q = q * jnp.sign(jnp.diag(r))
    var_target = scale / ((fan_in + fan_out) / 2.0)
    q = q * jnp.sqrt(var_target / jnp.maximum(jnp.var(q), 1e-12))
    return q.astype(dtype)


def reference(x, w1, b1, w2, b2):
    def swish(v):
        return v * jax.nn.sigmoid(v)
    h = swish(x @ w1 + b1.reshape(1, -1))
    h = swish(h @ w2 + b2.reshape(1, -1))
    return x + h


if __name__ == "__main__":
    hidden = 32       # hidden_channels
    n_rows = 300      # small; exercises the pack reshape and the partial last block

    key = jax.random.PRNGKey(0)
    kx, kw1, kw2 = jax.random.split(key, 3)

    x = jax.random.normal(kx, (n_rows, hidden), dtype=jnp.float32)

    # torch stores Linear weights as (out, in); we keep the transposed (in, out)
    # form so the kernel computes x @ W.  Biases zero-initialized (reset_parameters).
    w1 = glorot_orthogonal(kw1, hidden, hidden, scale=2.0)
    w2 = glorot_orthogonal(kw2, hidden, hidden, scale=2.0)
    b1 = jnp.zeros((hidden,), dtype=jnp.float32)
    b2 = jnp.zeros((hidden,), dtype=jnp.float32)

    ref = reference(x, w1, b1, w2, b2)

    # f32 path: exact-match check
    out_f32 = jax.block_until_ready(residual_layer(x, w1, b1, w2, b2, use_bf16=False))
    assert out_f32.shape == x.shape and out_f32.dtype == jnp.float32
    assert jnp.allclose(out_f32, ref, atol=1e-5, rtol=1e-5), "f32 mismatch vs reference"

    # bf16 fast path (default): bf16 output stream, f32 accumulation + f32 residual
    out_bf16 = jax.block_until_ready(residual_layer(x, w1, b1, w2, b2))
    assert out_bf16.shape == x.shape and out_bf16.dtype == jnp.bfloat16
    assert jnp.allclose(out_bf16.astype(jnp.float32), ref, atol=5e-2, rtol=5e-2), \
        "bf16 mismatch vs reference"

    print("KERNEL_OK")
</pallas_src>

<mosaic_0001>
module attributes {stable_mosaic.version = 11 : i64} {
  func.func @_residual_kernel(%arg0: i32, %arg1: memref<48x128xf32, #tpu.memory_space<vmem>>, %arg2: memref<128x128xf32, #tpu.memory_space<vmem>>, %arg3: memref<1x128xf32, #tpu.memory_space<vmem>>, %arg4: memref<128x128xf32, #tpu.memory_space<vmem>>, %arg5: memref<1x128xf32, #tpu.memory_space<vmem>>, %arg6: memref<48x128xf32, #tpu.memory_space<vmem>>) attributes {dimension_semantics = [#tpu.dimension_semantics<parallel>], iteration_bounds = array<i64: 2>, scalar_prefetch = 0 : i64, scratch_operands = 0 : i64, tpu.core_type = #tpu.core_type<tc>, window_params = [{transform_indices = @transform_0, window_bounds = array<i64: 48, 128>}, {pipeline_mode = #tpu.pipeline_mode<synchronous>, transform_indices = @transform_1, window_bounds = array<i64: 128, 128>}, {pipeline_mode = #tpu.pipeline_mode<synchronous>, transform_indices = @transform_2, window_bounds = array<i64: 1, 128>}, {pipeline_mode = #tpu.pipeline_mode<synchronous>, transform_indices = @transform_3, window_bounds = array<i64: 128, 128>}, {pipeline_mode = #tpu.pipeline_mode<synchronous>, transform_indices = @transform_4, window_bounds = array<i64: 1, 128>}, {transform_indices = @transform_5, window_bounds = array<i64: 48, 128>}]} {
    %c0 = arith.constant 0 : index
    %c0_0 = arith.constant 0 : index
    %0 = vector.load %arg1[%c0, %c0_0] : memref<48x128xf32, #tpu.memory_space<vmem>>, vector<48x128xf32>
    %c0_1 = arith.constant 0 : index
    %c0_2 = arith.constant 0 : index
    %1 = vector.load %arg2[%c0_1, %c0_2] : memref<128x128xf32, #tpu.memory_space<vmem>>, vector<128x128xf32>
    %cst = arith.constant dense<0.000000e+00> : vector<48x128xf32>
    %2 = tpu.matmul %0, %1, %cst {dimension_numbers = #tpu.dot_dimension_numbers<[1], [0], [0], [1], [0, 0, 1, 1], [], []>} : vector<48x128xf32>, vector<128x128xf32>, vector<48x128xf32> -> vector<48x128xf32>
    %c0_3 = arith.constant 0 : index
    %c0_4 = arith.constant 0 : index
    %3 = vector.load %arg3[%c0_3, %c0_4] : memref<1x128xf32, #tpu.memory_space<vmem>>, vector<1x128xf32>
    %4 = vector.broadcast %3 : vector<1x128xf32> to vector<48x128xf32>
    %5 = arith.addf %2, %4 : vector<48x128xf32>
    %6 = arith.negf %5 : vector<48x128xf32>
    %7 = math.exp %6 : vector<48x128xf32>
    %cst_5 = arith.constant 1.000000e+00 : f32
    %8 = vector.broadcast %cst_5 : f32 to vector<48x128xf32>
    %9 = arith.addf %8, %7 : vector<48x128xf32>
    %10 = arith.divf %8, %9 : vector<48x128xf32>
    %11 = arith.mulf %5, %10 : vector<48x128xf32>
    %c0_6 = arith.constant 0 : index
    %c0_7 = arith.constant 0 : index
    %12 = vector.load %arg4[%c0_6, %c0_7] : memref<128x128xf32, #tpu.memory_space<vmem>>, vector<128x128xf32>
    %cst_8 = arith.constant dense<0.000000e+00> : vector<48x128xf32>
    %13 = tpu.matmul %11, %12, %cst_8 {dimension_numbers = #tpu.dot_dimension_numbers<[1], [0], [0], [1], [0, 0, 1, 1], [], []>} : vector<48x128xf32>, vector<128x128xf32>, vector<48x128xf32> -> vector<48x128xf32>
    %c0_9 = arith.constant 0 : index
    %c0_10 = arith.constant 0 : index
    %14 = vector.load %arg5[%c0_9, %c0_10] : memref<1x128xf32, #tpu.memory_space<vmem>>, vector<1x128xf32>
    %15 = vector.broadcast %14 : vector<1x128xf32> to vector<48x128xf32>
    %16 = arith.addf %13, %15 : vector<48x128xf32>
    %17 = arith.negf %16 : vector<48x128xf32>
    %18 = math.exp %17 : vector<48x128xf32>
    %cst_11 = arith.constant 1.000000e+00 : f32
    %19 = vector.broadcast %cst_11 : f32 to vector<48x128xf32>
    %20 = arith.addf %19, %18 : vector<48x128xf32>
    %21 = arith.divf %19, %20 : vector<48x128xf32>
    %22 = arith.mulf %16, %21 : vector<48x128xf32>
    %23 = arith.addf %0, %22 : vector<48x128xf32>
    %c0_12 = arith.constant 0 : index
    %c0_13 = arith.constant 0 : index
    %24 = vector.load %arg6[%c0_12, %c0_13] : memref<48x128xf32, #tpu.memory_space<vmem>>, vector<48x128xf32>
    tpu.vector_store %arg6[%c0_12, %c0_13], %23 {strides = array<i32>} : memref<48x128xf32, #tpu.memory_space<vmem>>, vector<48x128xf32>,
    return
  }
  func.func @transform_0(%arg0: i32) -> (i32, i32) {
    %c0_i32 = arith.constant 0 : i32
    %c0_i32_0 = arith.constant 0 : i32
    return %arg0, %c0_i32 : i32, i32
  }
  func.func @transform_1(%arg0: i32) -> (i32, i32) {
    %c0_i32 = arith.constant 0 : i32
    %c0_i32_0 = arith.constant 0 : i32
    %c0_i32_1 = arith.constant 0 : i32
    return %c0_i32, %c0_i32_0 : i32, i32
  }
  func.func @transform_2(%arg0: i32) -> (i32, i32) {
    %c0_i32 = arith.constant 0 : i32
    %c0_i32_0 = arith.constant 0 : i32
    %c0_i32_1 = arith.constant 0 : i32
    return %c0_i32, %c0_i32_0 : i32, i32
  }
  func.func @transform_3(%arg0: i32) -> (i32, i32) {
    %c0_i32 = arith.constant 0 : i32
    %c0_i32_0 = arith.constant 0 : i32
    %c0_i32_1 = arith.constant 0 : i32
    return %c0_i32, %c0_i32_0 : i32, i32
  }
  func.func @transform_4(%arg0: i32) -> (i32, i32) {
    %c0_i32 = arith.constant 0 : i32
    %c0_i32_0 = arith.constant 0 : i32
    %c0_i32_1 = arith.constant 0 : i32
    return %c0_i32, %c0_i32_0 : i32, i32
  }
  func.func @transform_5(%arg0: i32) -> (i32, i32) {
    %c0_i32 = arith.constant 0 : i32
    %c0_i32_0 = arith.constant 0 : i32
    return %arg0, %c0_i32 : i32, i32
  }
}

</mosaic_0001>

<llo_original>
// kernel: residual_layer.1
$region0: #{residual_layer.1}
  #allocation0 [shape = 'u32[]', space=smem, size = 0x4, offset = 0x4, fixed_abs, tag = 'smem constant byte address 0x4 - core index']
  #allocation1 [shape = 'u32[72,128]{1,0:T(1,128)}', space=vmem, size = 0x9000, scoped, tag = 'internal scratch']
  %s0 = inlined_call_operand.vmem [shape: f32[75,128], index: 0, kind: input, shape index: {}]
  %s1 = inlined_call_operand.vmem [shape: f32[128,128], index: 1, kind: input, shape index: {}]
  %s2 = inlined_call_operand.vmem [shape: f32[1,128], index: 2, kind: input, shape index: {}]
  %s3 = inlined_call_operand.vmem [shape: f32[128,128], index: 3, kind: input, shape index: {}]
  %s4 = inlined_call_operand.vmem [shape: f32[1,128], index: 4, kind: input, shape index: {}]
  %s5 = inlined_call_operand.vmem [shape: f32[75,128], index: 5, kind: output, shape index: {}]
  %s6 = sld [smem:[#allocation0]]
  $region101: #{residual_layer.1} parent=0
    _
  %s8 = ssub.s32 1, %s6
  %s9 = scalar_select 0, %s8, %s6
  $region1: #{residual_layer.1} parent=0
    #allocation2 [shape = 'u8[49152]{0}', space=vmem, size = 0xc000, scoped, tag = 'output window, operand 0']
    loop: start=0, step=1, limit=4
    $region2: #{residual_layer.1} parent=1 // loop_pre_header
      _
    $region3: #{residual_layer.1} parent=1 // loop_header
      %s11 = sphi 0, %s15
      %p12 = scmp.ge.s32.totalorder %s11, 4
      %s21 = sphi 0, %s23
      %s24 = sphi 0, %s21
      %s25 = sphi 0, %s24
      %s41 = sphi 0, %s25
      %s45 = sphi 0, %s45
      %s47 = sphi 0, %s45
      %s48 = sphi 0, %s47
      %s62 = sphi 0, %s48
      %s66 = sphi 0, %s66
      %s68 = sphi 0, %s66
      %s69 = sphi 0, %s68
      %s83 = sphi 0, %s69
      %s87 = sphi 0, %s87
      %s89 = sphi 0, %s87
      %s90 = sphi 0, %s89
      %s104 = sphi 0, %s90
      %s108 = sphi 0, %s108
      %s110 = sphi 0, %s108
      %s111 = sphi 0, %s110
      %s125 = sphi 0, %s111
      %s131 = sphi 0, %s133
      %s134 = sphi 0, %s131
      %s135 = sphi 0, %s134
      %s151 = sphi 0, %s135
    $region4: #{residual_layer.1} parent=1 // loop_header_branch
      %14 = sbr.rel (%p12) target = $region8
    $region5: #{residual_layer.1} parent=1 // loop_body
      %s16 = ssub.s32 %s11, 1
      %s17 = ssub.s32 %s11, 2
      %s18 = sadd.s32 %s11, 1
      %s19 = ssub.s32 %s11, %s18
      %p20 = scmp.eq.s32.totalorder %s19, 0
      %s22 = sadd.s32 %s21, 1
      %s23 = scalar_select %p20, %s21, %s22
      %p26 = pneg %p20
      %p27 = scmp.eq.s32.totalorder %s11, 1
      %p28 = por %p26, %p27
      %p29 = scmp.ne.s32.totalorder %s21, %s24
      %p30 = scmp.eq.s32.totalorder %s11, 0
      %p31 = por %p29, %p30
      %p32 = scmp.ne.s32.totalorder %s21, %s24
      %p33 = scmp.eq.s32.totalorder %s16, 1
      %p34 = por %p32, %p33
      %p35 = scmp.ne.s32.totalorder %s24, %s25
      %p36 = scmp.eq.s32.totalorder %s16, 0
      %p37 = por %p35, %p36
      %p38 = scmp.ne.s32.totalorder %s24, %s25
      %p39 = scmp.eq.s32.totalorder %s17, 1
      %p40 = por %p38, %p39
      %p42 = scmp.ne.s32.totalorder %s25, %s41
      %p43 = scmp.eq.s32.totalorder %s17, 0
      %p44 = por %p42, %p43
      %s46 = sadd.s32 %s45, 1
      %p49 = scmp.eq.s32.totalorder %s11, 1
      %p50 = scmp.ne.s32.totalorder %s45, %s47
      %p51 = scmp.eq.s32.totalorder %s11, 0
      %p52 = por %p50, %p51
      %p53 = scmp.ne.s32.totalorder %s45, %s47
      %p54 = scmp.eq.s32.totalorder %s16, 1
      %p55 = por %p53, %p54
      %p56 = scmp.ne.s32.totalorder %s47, %s48
      %p57 = scmp.eq.s32.totalorder %s16, 0
      %p58 = por %p56, %p57
      %p59 = scmp.ne.s32.totalorder %s47, %s48
      %p60 = scmp.eq.s32.totalorder %s17, 1
      %p61 = por %p59, %p60
      %p63 = scmp.ne.s32.totalorder %s48, %s62
      %p64 = scmp.eq.s32.totalorder %s17, 0
      %p65 = por %p63, %p64
      %s67 = sadd.s32 %s66, 1
      %p70 = scmp.eq.s32.totalorder %s11, 1
      %p71 = scmp.ne.s32.totalorder %s66, %s68
      %p72 = scmp.eq.s32.totalorder %s11, 0
      %p73 = por %p71, %p72
      %p74 = scmp.ne.s32.totalorder %s66, %s68
      %p75 = scmp.eq.s32.totalorder %s16, 1
      %p76 = por %p74, %p75
      %p77 = scmp.ne.s32.totalorder %s68, %s69
      %p78 = scmp.eq.s32.totalorder %s16, 0
      %p79 = por %p77, %p78
      %p80 = scmp.ne.s32.totalorder %s68, %s69
      %p81 = scmp.eq.s32.totalorder %s17, 1
      %p82 = por %p80, %p81
      %p84 = scmp.ne.s32.totalorder %s69, %s83
      %p85 = scmp.eq.s32.totalorder %s17, 0
      %p86 = por %p84, %p85
      %s88 = sadd.s32 %s87, 1
      %p91 = scmp.eq.s32.totalorder %s11, 1
      %p92 = scmp.ne.s32.totalorder %s87, %s89
      %p93 = scmp.eq.s32.totalorder %s11, 0
      %p94 = por %p92, %p93
      %p95 = scmp.ne.s32.totalorder %s87, %s89
      %p96 = scmp.eq.s32.totalorder %s16, 1
      %p97 = por %p95, %p96
      %p98 = scmp.ne.s32.totalorder %s89, %s90
      %p99 = scmp.eq.s32.totalorder %s16, 0
      %p100 = por %p98, %p99
      %p101 = scmp.ne.s32.totalorder %s89, %s90
      %p102 = scmp.eq.s32.totalorder %s17, 1
      %p103 = por %p101, %p102
      %p105 = scmp.ne.s32.totalorder %s90, %s104
      %p106 = scmp.eq.s32.totalorder %s17, 0
      %p107 = por %p105, %p106
      %s109 = sadd.s32 %s108, 1
      %p112 = scmp.eq.s32.totalorder %s11, 1
      %p113 = scmp.ne.s32.totalorder %s108, %s110
      %p114 = scmp.eq.s32.totalorder %s11, 0
      %p115 = por %p113, %p114
      %p116 = scmp.ne.s32.totalorder %s108, %s110
      %p117 = scmp.eq.s32.totalorder %s16, 1
      %p118 = por %p116, %p117
      %p119 = scmp.ne.s32.totalorder %s110, %s111
      %p120 = scmp.eq.s32.totalorder %s16, 0
      %p121 = por %p119, %p120
      %p122 = scmp.ne.s32.totalorder %s110, %s111
      %p123 = scmp.eq.s32.totalorder %s17, 1
      %p124 = por %p122, %p123
      %p126 = scmp.ne.s32.totalorder %s111, %s125
      %p127 = scmp.eq.s32.totalorder %s17, 0
      %p128 = por %p126, %p127
      %s129 = ssub.s32 %s11, %s18
      %p130 = scmp.eq.s32.totalorder %s129, 0
      %s132 = sadd.s32 %s131, 1
      %s133 = scalar_select %p130, %s131, %s132
      %p136 = pneg %p130
      %p137 = scmp.eq.s32.totalorder %s11, 1
      %p138 = por %p136, %p137
      %p139 = scmp.ne.s32.totalorder %s131, %s134
      %p140 = scmp.eq.s32.totalorder %s11, 0
      %p141 = por %p139, %p140
      %p142 = scmp.ne.s32.totalorder %s131, %s134
      %p143 = scmp.eq.s32.totalorder %s16, 1
      %p144 = por %p142, %p143
      %p145 = scmp.ne.s32.totalorder %s134, %s135
      %p146 = scmp.eq.s32.totalorder %s16, 0
      %p147 = por %p145, %p146
      %p148 = scmp.ne.s32.totalorder %s134, %s135
      %p149 = scmp.eq.s32.totalorder %s17, 1
      %p150 = por %p148, %p149
      %p152 = scmp.ne.s32.totalorder %s135, %s151
      %p153 = scmp.eq.s32.totalorder %s17, 0
      %p154 = por %p152, %p153
      %p155 = scmp.le.s32.totalorder 1, %s11
      %p156 = scmp.lt.s32.totalorder %s11, 3
      %p157 = pnand %p155, %p156
      %p158 = pneg %p157
      // Predicated region
      $region9: #{residual_layer.1} parent=5 // pred_check
        _
      $region10: #{residual_layer.1} parent=5 // pred_check_branch
        %160 = sbr.rel (%p157) target = $region12
      $region11: #{residual_layer.1} parent=5 // pred_region
        %s161 = ssub.s32 %s11, 1
        // Predicated region
        $region13: #{residual_layer.1} parent=11 // pred_check
          %p162 = pneg %p58
        $region14: #{residual_layer.1} parent=11 // pred_check_branch
          %164 = sbr.rel (%p162) target = $region16
        $region15: #{residual_layer.1} parent=11 // pred_region
          _
        $region16: #{residual_layer.1} parent=11 // pred_fallthru
          _
        // Predicated region
        $region17: #{residual_layer.1} parent=11 // pred_check
          %p165 = pneg %p79
        $region18: #{residual_layer.1} parent=11 // pred_check_branch
          %167 = sbr.rel (%p165) target = $region20
        $region19: #{residual_layer.1} parent=11 // pred_region
          _
        $region20: #{residual_layer.1} parent=11 // pred_fallthru
          _
        // Predicated region
        $region21: #{residual_layer.1} parent=11 // pred_check
          %p168 = pneg %p100
        $region22: #{residual_layer.1} parent=11 // pred_check_branch
          %170 = sbr.rel (%p168) target = $region24
        $region23: #{residual_layer.1} parent=11 // pred_region
          _
        $region24: #{residual_layer.1} parent=11 // pred_fallthru
          _
        // Predicated region
        $region25: #{residual_layer.1} parent=11 // pred_check
          %p171 = pneg %p121
        $region26: #{residual_layer.1} parent=11 // pred_check_branch
          %173 = sbr.rel (%p171) target = $region28
        $region27: #{residual_layer.1} parent=11 // pred_region
          _
        $region28: #{residual_layer.1} parent=11 // pred_fallthru
          _
      $region12: #{residual_layer.1} parent=5 // pred_fallthru
        _
      %p174 = scmp.lt.s32.totalorder %s11, 2
      // Predicated region
      $region29: #{residual_layer.1} parent=5 // pred_check
        %p175 = pneg %p174
      $region30: #{residual_layer.1} parent=5 // pred_check_branch
        %177 = sbr.rel (%p175) target = $region32
      $region31: #{residual_layer.1} parent=5 // pred_region
        // Predicated region
        $region33: #{residual_layer.1} parent=31 // pred_check
          %p178 = pneg %p31
        $region34: #{residual_layer.1} parent=31 // pred_check_branch
          %180 = sbr.rel (%p178) target = $region36
        $region35: #{residual_layer.1} parent=31 // pred_region
          %s181 = smul.u32 6, %s11
          %s182 = ssub.s32 10, %s181
          %p183 = scmp.lt.s32.totalorder %s182, 6
          %s184 = scalar_select %p183, %s182, 6
          %s185 = smul.u32 8, %s184
          %p186 = scmp.lt.s32.totalorder %s181, 9
          %s187 = scalar_select %p186, %s181, 9
          %s188 = smul.addr %s187, 8
          %s189 = scalar_lea.vmem %s0, %s188
          %s190 = smul.u32 6, %s11
          %s191 = ssub.s32 10, %s190
          %p192 = scmp.lt.s32.totalorder %s191, 6
          %s193 = scalar_select %p192, %s191, 6
          %s194 = smul.u32 8, %s193
        $region36: #{residual_layer.1} parent=31 // pred_fallthru
          _
      $region32: #{residual_layer.1} parent=5 // pred_fallthru
        _
      %p195 = scmp.le.s32.totalorder 1, %s11
      %p196 = scmp.lt.s32.totalorder %s11, 3
      %p197 = pnand %p195, %p196
      %p198 = pneg %p197
      // Predicated region
      $region37: #{residual_layer.1} parent=5 // pred_check
        _
      $region38: #{residual_layer.1} parent=5 // pred_check_branch
        %200 = sbr.rel (%p197) target = $region40
      $region39: #{residual_layer.1} parent=5 // pred_region
        %s201 = ssub.s32 %s11, 1
        %s202 = smul.u32 6, %s16
        %s203 = ssub.s32 10, %s202
        %p204 = scmp.lt.s32.totalorder %s203, 6
        %s205 = scalar_select %p204, %s203, 6
        %s206 = smul.u32 8, %s205
        %p207 = scmp.lt.s32.totalorder %s202, 9
        %s208 = scalar_select %p207, %s202, 9
        %s209 = smul.addr %s208, 8
        %s210 = scalar_lea.vmem %s0, %s209
        %p211 = pneg %p37
        %p212 = pneg %p34
        %p213 = pneg %p58
        %p214 = pneg %p55
        %p215 = pneg %p79
        %p216 = pneg %p76
        %p217 = pneg %p100
        %p218 = pneg %p97
        %p219 = pneg %p121
        %p220 = pneg %p118
        %p221 = pneg %p147
        %p222 = pneg %p144
        %s223 = sand.u32 %s134, 1
        %s224 = sand.u32 %s134, 1
        %s225 = smul.addr %s224, 48
        %s226 = scalar_lea.vmem [#allocation2], %s225
        %s227 = smul.u32 6, %s16
        %s228 = ssub.s32 10, %s227
        %p229 = scmp.lt.s32.totalorder %s228, 6
        %s230 = scalar_select %p229, %s228, 6
        %s231 = smul.u32 8, %s230
        %p232 = scmp.lt.s32.totalorder %s227, 9
        %s233 = scalar_select %p232, %s227, 9
        %s234 = smul.addr %s233, 8
        %s235 = scalar_lea.vmem %s0, %s234
        %s236 = smul.u32 6, %s16
        %s237 = ssub.s32 10, %s236
        %p238 = scmp.lt.s32.totalorder %s237, 6
        %s239 = scalar_select %p238, %s237, 6
        %s240 = smul.u32 8, %s239
        %s241 = smul.u32 6, %s16
        %s242 = ssub.s32 10, %s241
        %p243 = scmp.lt.s32.totalorder %s242, 6
        %s244 = scalar_select %p243, %s242, 6
        %s245 = smul.u32 8, %s244
        %v246 = vld [vmem:[%s235] sm:$0xff]
        %v247 = vld [vmem:[%s235 + $0x8] sm:$0xff]
        %v248 = vld [vmem:[%s235 + $0x10] sm:$0xff]
        %v249 = vld [vmem:[%s235 + $0x18] sm:$0xff]
        %v250 = vld [vmem:[%s235 + $0x20] sm:$0xff]
        %v251 = vld [vmem:[%s235 + $0x28] sm:$0xff]
        %v252 = vld [vmem:[%s1] sm:$0xff]
        %v253 = vld [vmem:[%s1 + $0x8] sm:$0xff]
        %v254 = vld [vmem:[%s1 + $0x10] sm:$0xff]
        %v255 = vld [vmem:[%s1 + $0x18] sm:$0xff]
        %v256 = vld [vmem:[%s1 + $0x20] sm:$0xff]
        %v257 = vld [vmem:[%s1 + $0x28] sm:$0xff]
        %v258 = vld [vmem:[%s1 + $0x30] sm:$0xff]
        %v259 = vld [vmem:[%s1 + $0x38] sm:$0xff]
        %v260 = vld [vmem:[%s1 + $0x40] sm:$0xff]
        %v261 = vld [vmem:[%s1 + $0x48] sm:$0xff]
        %v262 = vld [vmem:[%s1 + $0x50] sm:$0xff]
        %v263 = vld [vmem:[%s1 + $0x58] sm:$0xff]
        %v264 = vld [vmem:[%s1 + $0x60] sm:$0xff]
        %v265 = vld [vmem:[%s1 + $0x68] sm:$0xff]
        %v266 = vld [vmem:[%s1 + $0x70] sm:$0xff]
        %v267 = vld [vmem:[%s1 + $0x78] sm:$0xff]
        %v268 = vld [vmem:[%s2] sm:$0x1]
        %v270 = vperm.slane %v268, 0
        %272 = vmatpush.msra.mxu0 %v267
        %273 = vmatpush.msra.mxu0 %v266
        %274 = vmatpush.msra.mxu0 %v265
        %275 = vmatpush.msra.mxu0 %v264
        %276 = vmatpush.msra.mxu0 %v263
        %277 = vmatpush.msra.mxu0 %v262
        %278 = vmatpush.msra.mxu0 %v261
        %279 = vmatpush.msra.mxu0 %v260
        %280 = vmatpush.msra.mxu0 %v259
        %281 = vmatpush.msra.mxu0 %v258
        %282 = vmatpush.msra.mxu0 %v257
        %283 = vmatpush.msra.mxu0 %v256
        %284 = vmatpush.msra.mxu0 %v255
        %285 = vmatpush.msra.mxu0 %v254
        %286 = vmatpush.msra.mxu0 %v253
        %287 = vmatpush.msra.mxu0 %v252
        %288 = vmatmul.f32.gmra.mxu0 %v246
        %v289 = vpop.f32.mrf.mxu0
        %v290 = vadd.f32 %v270, %v289
        %291 = vmatmul.f32.gmra.mxu0 %v247
        %v292 = vpop.f32.mrf.mxu0
        %v293 = vadd.f32 %v270, %v292
        %294 = vmatmul.f32.gmra.mxu0 %v248
        %v295 = vpop.f32.mrf.mxu0
        %v296 = vadd.f32 %v270, %v295
        %297 = vmatmul.f32.gmra.mxu0 %v249
        %v298 = vpop.f32.mrf.mxu0
        %v299 = vadd.f32 %v270, %v298
        %300 = vmatmul.f32.gmra.mxu0 %v250
        %v301 = vpop.f32.mrf.mxu0
        %v302 = vadd.f32 %v270, %v301
        %303 = vmatmul.f32.gmra.mxu0 %v251
        %v304 = vpop.f32.mrf.mxu0
        %v305 = vadd.f32 %v270, %v304
        %306 = vdwg.mxu0
        %v307 = vxor.u32 %v290, 2147483648
        %v308 = vxor.u32 %v293, 2147483648
        %v309 = vxor.u32 %v296, 2147483648
        %v310 = vxor.u32 %v299, 2147483648
        %v311 = vxor.u32 %v302, 2147483648
        %v312 = vxor.u32 %v305, 2147483648
        %v313 = vmul.f32 %v307, 1.442695
        %v314 = vpow.pop %v313
        %v315 = vmul.f32 %v308, 1.442695
        %v316 = vpow.pop %v315
        %v317 = vmul.f32 %v309, 1.442695
        %v318 = vpow.pop %v317
        %v319 = vmul.f32 %v310, 1.442695
        %v320 = vpow.pop %v319
        %v321 = vmul.f32 %v311, 1.442695
        %v322 = vpow.pop %v321
        %v323 = vmul.f32 %v312, 1.442695
        %v324 = vpow.pop %v323
        %v325 = vadd.f32 %v314, 1.0
        %v326 = vadd.f32 %v316, 1.0
        %v327 = vadd.f32 %v318, 1.0
        %v328 = vadd.f32 %v320, 1.0
        %v329 = vadd.f32 %v322, 1.0
        %v330 = vadd.f32 %v324, 1.0
        %v331 = vrcp.pop %v325
        %v332 = vmul.f32 %v325, %v331
        %v333 = vsub.f32 1.0, %v332
        %v334 = vmul.f32 %v331, %v333
        %v335 = vadd.f32 %v331, %v334
        %vm336 = vweird.f32 %v325
        %vm337 = vweird.f32 %v331
        %vm338 = vmor %vm336, %vm337
        %v339 = vsel %vm338, %v331, %v335
        %v340 = vand.u32 2147483647, %v325
        %vm341 = vcmp.eq.f32.partialorder %v340, 8.507059e+37
        %v342 = vand.u32 %v325, 2147483648
        %v343 = vor.u32 1.1754944e-38, %v342
        %v344 = vsel %vm341, %v343, %v339
        %v345 = vmul.f32 1.0, %v344
        %v346 = vrcp.pop %v326
        %v347 = vmul.f32 %v326, %v346
        %v348 = vsub.f32 1.0, %v347
        %v349 = vmul.f32 %v346, %v348
        %v350 = vadd.f32 %v346, %v349
        %vm351 = vweird.f32 %v326
        %vm352 = vweird.f32 %v346
        %vm353 = vmor %vm351, %vm352
        %v354 = vsel %vm353, %v346, %v350
        %v355 = vand.u32 2147483647, %v326
        %vm356 = vcmp.eq.f32.partialorder %v355, 8.507059e+37
        %v357 = vand.u32 %v326, 2147483648
        %v358 = vor.u32 1.1754944e-38, %v357
        %v359 = vsel %vm356, %v358, %v354
        %v360 = vmul.f32 1.0, %v359
        %v361 = vrcp.pop %v327
        %v362 = vmul.f32 %v327, %v361
        %v363 = vsub.f32 1.0, %v362
        %v364 = vmul.f32 %v361, %v363
        %v365 = vadd.f32 %v361, %v364
        %vm366 = vweird.f32 %v327
        %vm367 = vweird.f32 %v361
        %vm368 = vmor %vm366, %vm367
        %v369 = vsel %vm368, %v361, %v365
        %v370 = vand.u32 2147483647, %v327
        %vm371 = vcmp.eq.f32.partialorder %v370, 8.507059e+37
        %v372 = vand.u32 %v327, 2147483648
        %v373 = vor.u32 1.1754944e-38, %v372
        %v374 = vsel %vm371, %v373, %v369
        %v375 = vmul.f32 1.0, %v374
        %v376 = vrcp.pop %v328
        %v377 = vmul.f32 %v328, %v376
        %v378 = vsub.f32 1.0, %v377
        %v379 = vmul.f32 %v376, %v378
        %v380 = vadd.f32 %v376, %v379
        %vm381 = vweird.f32 %v328
        %vm382 = vweird.f32 %v376
        %vm383 = vmor %vm381, %vm382
        %v384 = vsel %vm383, %v376, %v380
        %v385 = vand.u32 2147483647, %v328
        %vm386 = vcmp.eq.f32.partialorder %v385, 8.507059e+37
        %v387 = vand.u32 %v328, 2147483648
        %v388 = vor.u32 1.1754944e-38, %v387
        %v389 = vsel %vm386, %v388, %v384
        %v390 = vmul.f32 1.0, %v389
        %v391 = vrcp.pop %v329
        %v392 = vmul.f32 %v329, %v391
        %v393 = vsub.f32 1.0, %v392
        %v394 = vmul.f32 %v391, %v393
        %v395 = vadd.f32 %v391, %v394
        %vm396 = vweird.f32 %v329
        %vm397 = vweird.f32 %v391
        %vm398 = vmor %vm396, %vm397
        %v399 = vsel %vm398, %v391, %v395
        %v400 = vand.u32 2147483647, %v329
        %vm401 = vcmp.eq.f32.partialorder %v400, 8.507059e+37
        %v402 = vand.u32 %v329, 2147483648
        %v403 = vor.u32 1.1754944e-38, %v402
        %v404 = vsel %vm401, %v403, %v399
        %v405 = vmul.f32 1.0, %v404
        %v406 = vrcp.pop %v330
        %v407 = vmul.f32 %v330, %v406
        %v408 = vsub.f32 1.0, %v407
        %v409 = vmul.f32 %v406, %v408
        %v410 = vadd.f32 %v406, %v409
        %vm411 = vweird.f32 %v330
        %vm412 = vweird.f32 %v406
        %vm413 = vmor %vm411, %vm412
        %v414 = vsel %vm413, %v406, %v410
        %v415 = vand.u32 2147483647, %v330
        %vm416 = vcmp.eq.f32.partialorder %v415, 8.507059e+37
        %v417 = vand.u32 %v330, 2147483648
        %v418 = vor.u32 1.1754944e-38, %v417
        %v419 = vsel %vm416, %v418, %v414
        %v420 = vmul.f32 1.0, %v419
        %v421 = vmul.f32 %v290, %v345
        %v422 = vmul.f32 %v293, %v360
        %v423 = vmul.f32 %v296, %v375
        %v424 = vmul.f32 %v299, %v390
        %v425 = vmul.f32 %v302, %v405
        %v426 = vmul.f32 %v305, %v420
        %v427 = vld [vmem:[%s3] sm:$0xff]
        %v428 = vld [vmem:[%s3 + $0x8] sm:$0xff]
        %v429 = vld [vmem:[%s3 + $0x10] sm:$0xff]
        %v430 = vld [vmem:[%s3 + $0x18] sm:$0xff]
        %v431 = vld [vmem:[%s3 + $0x20] sm:$0xff]
        %v432 = vld [vmem:[%s3 + $0x28] sm:$0xff]
        %v433 = vld [vmem:[%s3 + $0x30] sm:$0xff]
        %v434 = vld [vmem:[%s3 + $0x38] sm:$0xff]
        %v435 = vld [vmem:[%s3 + $0x40] sm:$0xff]
        %v436 = vld [vmem:[%s3 + $0x48] sm:$0xff]
        %v437 = vld [vmem:[%s3 + $0x50] sm:$0xff]
        %v438 = vld [vmem:[%s3 + $0x58] sm:$0xff]
        %v439 = vld [vmem:[%s3 + $0x60] sm:$0xff]
        %v440 = vld [vmem:[%s3 + $0x68] sm:$0xff]
        %v441 = vld [vmem:[%s3 + $0x70] sm:$0xff]
        %v442 = vld [vmem:[%s3 + $0x78] sm:$0xff]
        %v443 = vld [vmem:[%s4] sm:$0x1]
        %v445 = vperm.slane %v443, 0
        %447 = vmatpush.msra.mxu0 %v442
        %448 = vmatpush.msra.mxu0 %v441
        %449 = vmatpush.msra.mxu0 %v440
        %450 = vmatpush.msra.mxu0 %v439
        %451 = vmatpush.msra.mxu0 %v438
        %452 = vmatpush.msra.mxu0 %v437
        %453 = vmatpush.msra.mxu0 %v436
        %454 = vmatpush.msra.mxu0 %v435
        %455 = vmatpush.msra.mxu0 %v434
        %456 = vmatpush.msra.mxu0 %v433
        %457 = vmatpush.msra.mxu0 %v432
        %458 = vmatpush.msra.mxu0 %v431
        %459 = vmatpush.msra.mxu0 %v430
        %460 = vmatpush.msra.mxu0 %v429
        %461 = vmatpush.msra.mxu0 %v428
        %462 = vmatpush.msra.mxu0 %v427
        %463 = vmatmul.f32.gmra.mxu0 %v421
        %v464 = vpop.f32.mrf.mxu0
        %v465 = vadd.f32 %v445, %v464
        %466 = vmatmul.f32.gmra.mxu0 %v422
        %v467 = vpop.f32.mrf.mxu0
        %v468 = vadd.f32 %v445, %v467
        %469 = vmatmul.f32.gmra.mxu0 %v423
        %v470 = vpop.f32.mrf.mxu0
        %v471 = vadd.f32 %v445, %v470
        %472 = vmatmul.f32.gmra.mxu0 %v424
        %v473 = vpop.f32.mrf.mxu0
        %v474 = vadd.f32 %v445, %v473
        %475 = vmatmul.f32.gmra.mxu0 %v425
        %v476 = vpop.f32.mrf.mxu0
        %v477 = vadd.f32 %v445, %v476
        %478 = vmatmul.f32.gmra.mxu0 %v426
        %v479 = vpop.f32.mrf.mxu0
        %v480 = vadd.f32 %v445, %v479
        %481 = vdwg.mxu0
        %v482 = vxor.u32 %v465, 2147483648
        %v483 = vxor.u32 %v468, 2147483648
        %v484 = vxor.u32 %v471, 2147483648
        %v485 = vxor.u32 %v474, 2147483648
        %v486 = vxor.u32 %v477, 2147483648
        %v487 = vxor.u32 %v480, 2147483648
        %v488 = vmul.f32 %v482, 1.442695
        %v489 = vpow.pop %v488
        %v490 = vmul.f32 %v483, 1.442695
        %v491 = vpow.pop %v490
        %v492 = vmul.f32 %v484, 1.442695
        %v493 = vpow.pop %v492
        %v494 = vmul.f32 %v485, 1.442695
        %v495 = vpow.pop %v494
        %v496 = vmul.f32 %v486, 1.442695
        %v497 = vpow.pop %v496
        %v498 = vmul.f32 %v487, 1.442695
        %v499 = vpow.pop %v498
        %v500 = vadd.f32 %v489, 1.0
        %v501 = vadd.f32 %v491, 1.0
        %v502 = vadd.f32 %v493, 1.0
        %v503 = vadd.f32 %v495, 1.0
        %v504 = vadd.f32 %v497, 1.0
        %v505 = vadd.f32 %v499, 1.0
        %v506 = vrcp.pop %v500
        %v507 = vmul.f32 %v500, %v506
        %v508 = vsub.f32 1.0, %v507
        %v509 = vmul.f32 %v506, %v508
        %v510 = vadd.f32 %v506, %v509
        %vm511 = vweird.f32 %v500
        %vm512 = vweird.f32 %v506
        %vm513 = vmor %vm511, %vm512
        %v514 = vsel %vm513, %v506, %v510
        %v515 = vand.u32 2147483647, %v500
        %vm516 = vcmp.eq.f32.partialorder %v515, 8.507059e+37
        %v517 = vand.u32 %v500, 2147483648
        %v518 = vor.u32 1.1754944e-38, %v517
        %v519 = vsel %vm516, %v518, %v514
        %v520 = vmul.f32 1.0, %v519
        %v521 = vrcp.pop %v501
        %v522 = vmul.f32 %v501, %v521
        %v523 = vsub.f32 1.0, %v522
        %v524 = vmul.f32 %v521, %v523
        %v525 = vadd.f32 %v521, %v524
        %vm526 = vweird.f32 %v501
        %vm527 = vweird.f32 %v521
        %vm528 = vmor %vm526, %vm527
        %v529 = vsel %vm528, %v521, %v525
        %v530 = vand.u32 2147483647, %v501
        %vm531 = vcmp.eq.f32.partialorder %v530, 8.507059e+37
        %v532 = vand.u32 %v501, 2147483648
        %v533 = vor.u32 1.1754944e-38, %v532
        %v534 = vsel %vm531, %v533, %v529
        %v535 = vmul.f32 1.0, %v534
        %v536 = vrcp.pop %v502
        %v537 = vmul.f32 %v502, %v536
        %v538 = vsub.f32 1.0, %v537
        %v539 = vmul.f32 %v536, %v538
        %v540 = vadd.f32 %v536, %v539
        %vm541 = vweird.f32 %v502
        %vm542 = vweird.f32 %v536
        %vm543 = vmor %vm541, %vm542
        %v544 = vsel %vm543, %v536, %v540
        %v545 = vand.u32 2147483647, %v502
        %vm546 = vcmp.eq.f32.partialorder %v545, 8.507059e+37
        %v547 = vand.u32 %v502, 2147483648
        %v548 = vor.u32 1.1754944e-38, %v547
        %v549 = vsel %vm546, %v548, %v544
        %v550 = vmul.f32 1.0, %v549
        %v551 = vrcp.pop %v503
        %v552 = vmul.f32 %v503, %v551
        %v553 = vsub.f32 1.0, %v552
        %v554 = vmul.f32 %v551, %v553
        %v555 = vadd.f32 %v551, %v554
        %vm556 = vweird.f32 %v503
        %vm557 = vweird.f32 %v551
        %vm558 = vmor %vm556, %vm557
        %v559 = vsel %vm558, %v551, %v555
        %v560 = vand.u32 2147483647, %v503
        %vm561 = vcmp.eq.f32.partialorder %v560, 8.507059e+37
        %v562 = vand.u32 %v503, 2147483648
        %v563 = vor.u32 1.1754944e-38, %v562
        %v564 = vsel %vm561, %v563, %v559
        %v565 = vmul.f32 1.0, %v564
        %v566 = vrcp.pop %v504
        %v567 = vmul.f32 %v504, %v566
        %v568 = vsub.f32 1.0, %v567
        %v569 = vmul.f32 %v566, %v568
        %v570 = vadd.f32 %v566, %v569
        %vm571 = vweird.f32 %v504
        %vm572 = vweird.f32 %v566
        %vm573 = vmor %vm571, %vm572
        %v574 = vsel %vm573, %v566, %v570
        %v575 = vand.u32 2147483647, %v504
        %vm576 = vcmp.eq.f32.partialorder %v575, 8.507059e+37
        %v577 = vand.u32 %v504, 2147483648
        %v578 = vor.u32 1.1754944e-38, %v577
        %v579 = vsel %vm576, %v578, %v574
        %v580 = vmul.f32 1.0, %v579
        %v581 = vrcp.pop %v505
        %v582 = vmul.f32 %v505, %v581
        %v583 = vsub.f32 1.0, %v582
        %v584 = vmul.f32 %v581, %v583
        %v585 = vadd.f32 %v581, %v584
        %vm586 = vweird.f32 %v505
        %vm587 = vweird.f32 %v581
        %vm588 = vmor %vm586, %vm587
        %v589 = vsel %vm588, %v581, %v585
        %v590 = vand.u32 2147483647, %v505
        %vm591 = vcmp.eq.f32.partialorder %v590, 8.507059e+37
        %v592 = vand.u32 %v505, 2147483648
        %v593 = vor.u32 1.1754944e-38, %v592
        %v594 = vsel %vm591, %v593, %v589
        %v595 = vmul.f32 1.0, %v594
        %v596 = vmul.f32 %v465, %v520
        %v597 = vmul.f32 %v468, %v535
        %v598 = vmul.f32 %v471, %v550
        %v599 = vmul.f32 %v474, %v565
        %v600 = vmul.f32 %v477, %v580
        %v601 = vmul.f32 %v480, %v595
        %v602 = vadd.f32 %v246, %v596
        %v603 = vadd.f32 %v247, %v597
        %v604 = vadd.f32 %v248, %v598
        %v605 = vadd.f32 %v249, %v599
        %v606 = vadd.f32 %v250, %v600
        %v607 = vadd.f32 %v251, %v601
        %608 = vst [vmem:[%s226] sm:$0xff] %v602
        %609 = vst [vmem:[%s226 + $0x8] sm:$0xff] %v603
        %610 = vst [vmem:[%s226 + $0x10] sm:$0xff] %v604
        %611 = vst [vmem:[%s226 + $0x18] sm:$0xff] %v605
        %612 = vst [vmem:[%s226 + $0x20] sm:$0xff] %v606
        %613 = vst [vmem:[%s226 + $0x28] sm:$0xff] %v607
        %s614 = sand.u32 %s134, 1
        %s615 = sand.u32 %s134, 1
        %s616 = smul.addr %s615, 48
        %s617 = scalar_lea.vmem [#allocation2], %s616
        // Predicated region
        $region41: #{residual_layer.1} parent=39 // pred_check
          %p618 = pneg %p144
        $region42: #{residual_layer.1} parent=39 // pred_check_branch
          %620 = sbr.rel (%p618) target = $region44
        $region43: #{residual_layer.1} parent=39 // pred_region
          %s621 = smul.u32 6, %s16
          %s622 = ssub.s32 10, %s621
          %p623 = scmp.lt.s32.totalorder %s622, 6
          %s624 = scalar_select %p623, %s622, 6
          %s625 = smul.u32 8, %s624
          %p626 = scmp.ne.s32.totalorder 0, %s625
          %s627 = smul.addr %s621, 8
          %s628 = scalar_lea.vmem %s5, %s627
          // Predicated region
          $region45: #{residual_layer.1} parent=43 // pred_check
            %p629 = pneg %p626
          $region46: #{residual_layer.1} parent=43 // pred_check_branch
            %631 = sbr.rel (%p629) target = $region48
          $region47: #{residual_layer.1} parent=43 // pred_region
            // Predicated region
            $region49: #{residual_layer.1} parent=47 // pred_check
              _
            $region50: #{residual_layer.1} parent=47 // pred_check_branch
              %633 = sbr.rel (0) target = $region52
            $region51: #{residual_layer.1} parent=47 // pred_region
              // Predicated region
              $region71: #{residual_layer.1} parent=51 // pred_check
                _
              $region72: #{residual_layer.1} parent=51 // pred_check_branch
                %694 = sbr.rel (0) target = $region74
              $region73: #{residual_layer.1} parent=51 // pred_region
                %s695 = sdiv.u32.pop %s624, 6
                %s696 = srem.u32.pop %s624, 6
                // While loop
                $region75: #{residual_layer.1} parent=73 // loop_pre_header
                  _
                $region76: #{residual_layer.1} parent=73 // loop_header
                  %s698 = sphi 0, %s700
                  %p699 = scmp.ge.s32.totalorder %s698, %s695
                  %s703 = sphi 0, %s720
                  %s704 = sphi %s617, %s723
                  %s705 = sphi %s628, %s724
                $region77: #{residual_layer.1} parent=73 // loop_header_branch
                  %702 = sbr.rel (%p699) target = $region81
                $region78: #{residual_layer.1} parent=73 // loop_body
                  %v706 = vld [vmem:[%s704] sm:$0xff]
                  %707 = vst [vmem:[%s705] sm:$0xff] %v706
                  %v708 = vld [vmem:[%s704 + $0x8] sm:$0xff]
                  %709 = vst [vmem:[%s705 + $0x8] sm:$0xff] %v708
                  %v710 = vld [vmem:[%s704 + $0x10] sm:$0xff]
                  %711 = vst [vmem:[%s705 + $0x10] sm:$0xff] %v710
                  %v712 = vld [vmem:[%s704 + $0x18] sm:$0xff]
                  %713 = vst [vmem:[%s705 + $0x18] sm:$0xff] %v712
                  %v714 = vld [vmem:[%s704 + $0x20] sm:$0xff]
                  %715 = vst [vmem:[%s705 + $0x20] sm:$0xff] %v714
                  %v716 = vld [vmem:[%s704 + $0x28] sm:$0xff]
                  %717 = vst [vmem:[%s705 + $0x28] sm:$0xff] %v716
                  %s718 = sadd.s32 1, %s703
                  %p719 = scmp.ge.s32.totalorder %s718, %s695
                  %s720 = scalar_select %p719, 0, %s718
                  %s721 = smul.u32 %s720, 48
                  %s722 = smul.u32 %s720, 48
                  %s723 = scalar_lea.vmem %s617, %s721 [#allocation2]
                  %s724 = scalar_lea.vmem %s628, %s722
                $region79: #{residual_layer.1} parent=73 // loop_footer
                  %s700 = sadd.s32 %s698, 1
                $region80: #{residual_layer.1} parent=73 // loop_footer_branch
                  %697 = sbr.rel target = $region76
                $region81: #{residual_layer.1} parent=73 // loop_exit
                  _
                %s725 = sdiv.u32.pop %s624, 6
                %s726 = srem.u32.pop %s624, 6
                %s727 = smul.u32 %s725, 6
                %s728 = smul.u32 8, %s727
                %s729 = scalar_lea.vmem %s617, %s728 [#allocation2]
                %s730 = smul.u32 8, %s727
                %s731 = scalar_lea.vmem %s628, %s730
                // While loop
                $region82: #{residual_layer.1} parent=73 // loop_pre_header
                  _
                $region83: #{residual_layer.1} parent=73 // loop_header
                  %s733 = sphi 0, %s735
                  %p734 = scmp.ge.s32.totalorder %s733, %s726
                  %s738 = sphi 0, %s745
                  %s739 = sphi %s729, %s748
                  %s740 = sphi %s731, %s749
                $region84: #{residual_layer.1} parent=73 // loop_header_branch
                  %737 = sbr.rel (%p734) target = $region88
                $region85: #{residual_layer.1} parent=73 // loop_body
                  %v741 = vld [vmem:[%s739] sm:$0xff]
                  %742 = vst [vmem:[%s740] sm:$0xff] %v741
                  %s743 = sadd.s32 1, %s738
                  %p744 = scmp.ge.s32.totalorder %s743, %s726
                  %s745 = scalar_select %p744, 0, %s743
                  %s746 = smul.u32 %s745, 8
                  %s747 = smul.u32 %s745, 8
                  %s748 = scalar_lea.vmem %s729, %s746 [#allocation2]
                  %s749 = scalar_lea.vmem %s731, %s747
                $region86: #{residual_layer.1} parent=73 // loop_footer
                  %s735 = sadd.s32 %s733, 1
                $region87: #{residual_layer.1} parent=73 // loop_footer_branch
                  %732 = sbr.rel target = $region83
                $region88: #{residual_layer.1} parent=73 // loop_exit
                  _
              $region74: #{residual_layer.1} parent=51 // pred_fallthru
                _
              // Predicated region
              $region89: #{residual_layer.1} parent=51 // pred_check
                _
              $region90: #{residual_layer.1} parent=51 // pred_check_branch
                %751 = sbr.rel target = $region92
              $region91: #{residual_layer.1} parent=51 // pred_region
                _
              $region92: #{residual_layer.1} parent=51 // pred_fallthru
                _
            $region52: #{residual_layer.1} parent=47 // pred_fallthru
              _
            // Predicated region
            $region53: #{residual_layer.1} parent=47 // pred_check
              _
            $region54: #{residual_layer.1} parent=47 // pred_check_branch
              %635 = sbr.rel target = $region56
            $region55: #{residual_layer.1} parent=47 // pred_region
              %s637 = ssub.s32 256, 1
              %s638 = sdiv.u32.pop %s624, 6
              %s639 = srem.u32.pop %s624, 6
              // While loop
              $region57: #{residual_layer.1} parent=55 // loop_pre_header
                _
              $region58: #{residual_layer.1} parent=55 // loop_header
                %s641 = sphi 0, %s643
                %p642 = scmp.ge.s32.totalorder %s641, %s638
                %s646 = sphi 0, %s663
                %s647 = sphi %s617, %s666
                %s648 = sphi %s628, %s667
              $region59: #{residual_layer.1} parent=55 // loop_header_branch
                %645 = sbr.rel (%p642) target = $region63
              $region60: #{residual_layer.1} parent=55 // loop_body
                %v649 = vld [vmem:[%s647] sm:%s637]
                %650 = vst [vmem:[%s648] sm:%s637] %v649
                %v651 = vld [vmem:[%s647 + $0x8] sm:%s637]
                %652 = vst [vmem:[%s648 + $0x8] sm:%s637] %v651
                %v653 = vld [vmem:[%s647 + $0x10] sm:%s637]
                %654 = vst [vmem:[%s648 + $0x10] sm:%s637] %v653
                %v655 = vld [vmem:[%s647 + $0x18] sm:%s637]
                %656 = vst [vmem:[%s648 + $0x18] sm:%s637] %v655
                %v657 = vld [vmem:[%s647 + $0x20] sm:%s637]
                %658 = vst [vmem:[%s648 + $0x20] sm:%s637] %v657
                %v659 = vld [vmem:[%s647 + $0x28] sm:%s637]
                %660 = vst [vmem:[%s648 + $0x28] sm:%s637] %v659
                %s661 = sadd.s32 1, %s646
                %p662 = scmp.ge.s32.totalorder %s661, %s638
                %s663 = scalar_select %p662, 0, %s661
                %s664 = smul.u32 %s663, 48
                %s665 = smul.u32 %s663, 48
                %s666 = scalar_lea.vmem %s617, %s664 [#allocation2]
                %s667 = scalar_lea.vmem %s628, %s665
              $region61: #{residual_layer.1} parent=55 // loop_footer
                %s643 = sadd.s32 %s641, 1
              $region62: #{residual_layer.1} parent=55 // loop_footer_branch
                %640 = sbr.rel target = $region58
              $region63: #{residual_layer.1} parent=55 // loop_exit
                _
              %s668 = sdiv.u32.pop %s624, 6
              %s669 = srem.u32.pop %s624, 6
              %s670 = smul.u32 %s668, 6
              %s671 = smul.u32 8, %s670
              %s672 = scalar_lea.vmem %s617, %s671 [#allocation2]
              %s673 = smul.u32 8, %s670
              %s674 = scalar_lea.vmem %s628, %s673
              // While loop
              $region64: #{residual_layer.1} parent=55 // loop_pre_header
                _
              $region65: #{residual_layer.1} parent=55 // loop_header
                %s676 = sphi 0, %s678
                %p677 = scmp.ge.s32.totalorder %s676, %s669
                %s681 = sphi 0, %s688
                %s682 = sphi %s672, %s691
                %s683 = sphi %s674, %s692
              $region66: #{residual_layer.1} parent=55 // loop_header_branch
                %680 = sbr.rel (%p677) target = $region70
              $region67: #{residual_layer.1} parent=55 // loop_body
                %v684 = vld [vmem:[%s682] sm:%s637]
                %685 = vst [vmem:[%s683] sm:%s637] %v684
                %s686 = sadd.s32 1, %s681
                %p687 = scmp.ge.s32.totalorder %s686, %s669
                %s688 = scalar_select %p687, 0, %s686
                %s689 = smul.u32 %s688, 8
                %s690 = smul.u32 %s688, 8
                %s691 = scalar_lea.vmem %s672, %s689 [#allocation2]
                %s692 = scalar_lea.vmem %s674, %s690
              $region68: #{residual_layer.1} parent=55 // loop_footer
                %s678 = sadd.s32 %s676, 1
              $region69: #{residual_layer.1} parent=55 // loop_footer_branch
                %675 = sbr.rel target = $region65
              $region70: #{residual_layer.1} parent=55 // loop_exit
                _
            $region56: #{residual_layer.1} parent=47 // pred_fallthru
              _
          $region48: #{residual_layer.1} parent=43 // pred_fallthru
            _
          %752 = vnop
        $region44: #{residual_layer.1} parent=39 // pred_fallthru
          _
      $region40: #{residual_layer.1} parent=5 // pred_fallthru
        _
      %p753 = scmp.le.s32.totalorder 2, %s11
      // Predicated region
      $region93: #{residual_layer.1} parent=5 // pred_check
        %p754 = pneg %p753
      $region94: #{residual_layer.1} parent=5 // pred_check_branch
        %756 = sbr.rel (%p754) target = $region96
      $region95: #{residual_layer.1} parent=5 // pred_region
        %s757 = ssub.s32 %s11, 2
        // Predicated region
        $region97: #{residual_layer.1} parent=95 // pred_check
          %p758 = pneg %p150
        $region98: #{residual_layer.1} parent=95 // pred_check_branch
          %760 = sbr.rel (%p758) target = $region100
        $region99: #{residual_layer.1} parent=95 // pred_region
          %s761 = sand.u32 %s135, 1
          %s762 = sand.u32 %s135, 1
          %s763 = smul.addr %s762, 48
          %s764 = scalar_lea.vmem [#allocation2], %s763
        $region100: #{residual_layer.1} parent=95 // pred_fallthru
          _
      $region96: #{residual_layer.1} parent=5 // pred_fallthru
        _
    $region6: #{residual_layer.1} parent=1 // loop_footer
      %s15 = sadd.s32 1, %s11
    $region7: #{residual_layer.1} parent=1 // loop_footer_branch
      %10 = sbr.rel target = $region3
    $region8: #{residual_layer.1} parent=1 // loop_exit
      _

</llo_original>
